<compile_context>
chip_gen: v6e
topology: v6e:2x2x1
jax: 0.10.0
libtpu: 0.0.40
codegen_flags: <defaults>
</compile_context>

<pallas_src>
import jax
import jax.numpy as jnp
from jax.experimental import pallas as pl
from jax.experimental.pallas import tpu as pltpu


def cat_forward(x1, x2):
    """Equivalent of Model.forward(x1, x2), ints 5..9 treated as (1,1) tensors."""
    x1 = jnp.asarray(x1, dtype=jnp.float32)
    x2 = jnp.asarray(x2, dtype=jnp.float32)
    assert x1.ndim == 2 and x2.ndim == 2 and x1.shape[0] == x2.shape[0]

    b, c1 = x1.shape
    _, c2 = x2.shape
    n_const = 5                      # the ints 5..9
    out_cols = c1 + n_const + c2

    # Flatten to 1-D so SMEM allocations stay at next_pow2(4*N) bytes instead
    # of padding to [ceil(R/8)*8, ceil(C/128)*128] words.
    x1f = x1.reshape(-1)
    x2f = x2.reshape(-1)

    def _cat_kernel(x1_ref, x2_ref, out_ref):
        # Scalar-only kernel: every ref lives in SMEM; b/c1/c2 are small
        # static ints, so these Python loops unroll to a few sld/sst ops.
        for r in range(b):
            ob = r * out_cols
            for j in range(c1):
                out_ref[ob + j] = x1_ref[r * c1 + j]
            for k in range(n_const):
                out_ref[ob + c1 + k] = jnp.float32(5 + k)
            for j in range(c2):
                out_ref[ob + c1 + n_const + j] = x2_ref[r * c2 + j]

    out_flat = pl.pallas_call(
        _cat_kernel,
        out_shape=jax.ShapeDtypeStruct((b * out_cols,), jnp.float32),
        in_specs=[
            pl.BlockSpec(memory_space=pltpu.SMEM),
            pl.BlockSpec(memory_space=pltpu.SMEM),
        ],
        out_specs=pl.BlockSpec(memory_space=pltpu.SMEM),
    )(x1f, x2f)

    return out_flat.reshape(b, out_cols)


if __name__ == "__main__":
    key = jax.random.PRNGKey(0)
    k1, k2 = jax.random.split(key)
    # Shapes implied by the module's globals: x1, x2 ~ randn(1, 2)
    x1 = jax.random.normal(k1, (1, 2), dtype=jnp.float32)
    x2 = jax.random.normal(k2, (1, 2), dtype=jnp.float32)

    out = cat_forward(x1, x2)
    out = jax.block_until_ready(out)

    # Reference check in plain JAX.
    consts = jnp.arange(5, 10, dtype=jnp.float32)[None, :]
    ref = jnp.concatenate([x1, consts, x2], axis=1)
    assert out.shape == (1, 9), out.shape
    assert jnp.allclose(out, ref), (out, ref)

    print("KERNEL_OK")
</pallas_src>

<mosaic_0001>
module attributes {stable_mosaic.version = 11 : i64} {
  func.func @_cat_kernel(%arg0: memref<2xf32, #tpu.memory_space<smem>>, %arg1: memref<2xf32, #tpu.memory_space<smem>>, %arg2: memref<9xf32, #tpu.memory_space<smem>>) attributes {dimension_semantics = [], scalar_prefetch = 0 : i64, scratch_operands = 0 : i64, tpu.core_type = #tpu.core_type<tc>} {
    %c0 = arith.constant 0 : index
    %0 = memref.load %arg0[%c0] : memref<2xf32, #tpu.memory_space<smem>>
    %c0_0 = arith.constant 0 : index
    %1 = memref.load %arg2[%c0_0] : memref<9xf32, #tpu.memory_space<smem>>
    memref.store %0, %arg2[%c0_0] : memref<9xf32, #tpu.memory_space<smem>>
    %c1 = arith.constant 1 : index
    %2 = memref.load %arg0[%c1] : memref<2xf32, #tpu.memory_space<smem>>
    %c1_1 = arith.constant 1 : index
    %3 = memref.load %arg2[%c1_1] : memref<9xf32, #tpu.memory_space<smem>>
    memref.store %2, %arg2[%c1_1] : memref<9xf32, #tpu.memory_space<smem>>
    %cst = arith.constant 5.000000e+00 : f32
    %c2 = arith.constant 2 : index
    %4 = memref.load %arg2[%c2] : memref<9xf32, #tpu.memory_space<smem>>
    memref.store %cst, %arg2[%c2] : memref<9xf32, #tpu.memory_space<smem>>
    %cst_2 = arith.constant 6.000000e+00 : f32
    %c3 = arith.constant 3 : index
    %5 = memref.load %arg2[%c3] : memref<9xf32, #tpu.memory_space<smem>>
    memref.store %cst_2, %arg2[%c3] : memref<9xf32, #tpu.memory_space<smem>>
    %cst_3 = arith.constant 7.000000e+00 : f32
    %c4 = arith.constant 4 : index
    %6 = memref.load %arg2[%c4] : memref<9xf32, #tpu.memory_space<smem>>
    memref.store %cst_3, %arg2[%c4] : memref<9xf32, #tpu.memory_space<smem>>
    %cst_4 = arith.constant 8.000000e+00 : f32
    %c5 = arith.constant 5 : index
    %7 = memref.load %arg2[%c5] : memref<9xf32, #tpu.memory_space<smem>>
    memref.store %cst_4, %arg2[%c5] : memref<9xf32, #tpu.memory_space<smem>>
    %cst_5 = arith.constant 9.000000e+00 : f32
    %c6 = arith.constant 6 : index
    %8 = memref.load %arg2[%c6] : memref<9xf32, #tpu.memory_space<smem>>
    memref.store %cst_5, %arg2[%c6] : memref<9xf32, #tpu.memory_space<smem>>
    %c0_6 = arith.constant 0 : index
    %9 = memref.load %arg1[%c0_6] : memref<2xf32, #tpu.memory_space<smem>>
    %c7 = arith.constant 7 : index
    %10 = memref.load %arg2[%c7] : memref<9xf32, #tpu.memory_space<smem>>
    memref.store %9, %arg2[%c7] : memref<9xf32, #tpu.memory_space<smem>>
    %c1_7 = arith.constant 1 : index
    %11 = memref.load %arg1[%c1_7] : memref<2xf32, #tpu.memory_space<smem>>
    %c8 = arith.constant 8 : index
    %12 = memref.load %arg2[%c8] : memref<9xf32, #tpu.memory_space<smem>>
    memref.store %11, %arg2[%c8] : memref<9xf32, #tpu.memory_space<smem>>
    return
  }
}

</mosaic_0001>

<llo_original>
// kernel: tpu_custom_call.1
$region0: #{tpu_custom_call.1}
  #allocation0 [shape = 'u32[]', space=smem, size = 0x4, offset = 0x4, fixed_abs, tag = 'smem constant byte address 0x4 - core index']
  #allocation1 [shape = 'u32[144,128]{1,0:T(1,128)}', space=vmem, size = 0x12000, scoped, tag = 'internal scratch']
  %s0 = inlined_call_operand.hbm [shape: f32[2], index: 0, kind: input, shape index: {}]
  %s1 = inlined_call_operand.vmem [shape: f32[2], index: 1, kind: input, shape index: {}]
  %s2 = inlined_call_operand.hbm [shape: f32[9], index: 2, kind: output, shape index: {}]
  %s3 = sld [smem:[#allocation0]]
  $region26: #{tpu_custom_call.1} parent=0
    _
  %s5 = ssub.s32 1, %s3
  %s6 = scalar_select 0, %s5, %s3
  $region1: #{tpu_custom_call.1} parent=0
    #allocation2 [shape = 'u8[512]{0}', space=smem, size = 0x200, scoped, tag = 'input window, operand 0, single buffered']
    #allocation3 [shape = 's32[1]{0}', space=sflag, size = 0x4, scoped, tag = 'scoped memory for tpu_custom_call.1']
    #allocation4 [shape = 's32[1]{0}', space=sflag, size = 0x4, scoped, tag = 'scoped memory for tpu_custom_call.1']
    #allocation5 [shape = 's32[1]{0}', space=sflag, size = 0x4, scoped, tag = 'scoped memory for tpu_custom_call.1']
    #allocation6 [shape = 'u8[512]{0}', space=smem, size = 0x200, scoped, tag = 'input window, operand 1, single buffered']
    #allocation7 [shape = 'u8[512]{0}', space=smem, size = 0x200, scoped, tag = 'output window, operand 0, single buffered']
    %7 = vsyncpa [#allocation3], 0
    %8 = vsyncpa [#allocation5], 0
    %9 = vsyncpa [#allocation4], 0
    // Predicated region
    $region2: #{tpu_custom_call.1} parent=1 // pred_check
      _
    $region3: #{tpu_custom_call.1} parent=1 // pred_check_branch
      %11 = sbr.rel (0) target = $region5
    $region4: #{tpu_custom_call.1} parent=1 // pred_region
      %s13 = ssub.s32 16, 16
      %14 = vsyncadd [#allocation3], %s13
      %17 = dma.hbm_to_smem %s0, 16, [#allocation2], [#allocation3]
    $region5: #{tpu_custom_call.1} parent=1 // pred_fallthru
      _
    // Predicated region
    $region6: #{tpu_custom_call.1} parent=1 // pred_check
      _
    $region7: #{tpu_custom_call.1} parent=1 // pred_check_branch
      %19 = sbr.rel (0) target = $region9
    $region8: #{tpu_custom_call.1} parent=1 // pred_region
      %s21 = ssub.s32 16, 16
      %22 = vsyncadd [#allocation5], %s21
      %s24 = sshll.u32 %s1, 4
      %s25 = int_to_ptr.vmem [resolvable:$true] %s24
      %27 = dma.vmem_to_smem %s25, 16, [#allocation6], [#allocation5]
    $region9: #{tpu_custom_call.1} parent=1 // pred_fallthru
      _
    // Predicated region
    $region10: #{tpu_custom_call.1} parent=1 // pred_check
      _
    $region11: #{tpu_custom_call.1} parent=1 // pred_check_branch
      %29 = sbr.rel (0) target = $region13
    $region12: #{tpu_custom_call.1} parent=1 // pred_region
      %30 = dma.done [#allocation3], 16
    $region13: #{tpu_custom_call.1} parent=1 // pred_fallthru
      _
    // Predicated region
    $region14: #{tpu_custom_call.1} parent=1 // pred_check
      _
    $region15: #{tpu_custom_call.1} parent=1 // pred_check_branch
      %32 = sbr.rel (0) target = $region17
    $region16: #{tpu_custom_call.1} parent=1 // pred_region
      %33 = dma.done [#allocation5], 16
    $region17: #{tpu_custom_call.1} parent=1 // pred_fallthru
      _
    %34 = sfence
    %s35 = sld [smem:[#allocation2]]
    %s36 = scalar_lea.smem [#allocation7], 0
    %37 = sst [smem:[%s36]] %s35
    %s38 = sld [smem:[#allocation2 + $0x1]]
    %s39 = scalar_lea.smem [#allocation7], 1
    %40 = sst [smem:[%s39]] %s38
    %s41 = scalar_lea.smem [#allocation7], 2
    %42 = sst [smem:[%s41]] 5.0
    %s43 = scalar_lea.smem [#allocation7], 3
    %44 = sst [smem:[%s43]] 6.0
    %s45 = scalar_lea.smem [#allocation7], 4
    %46 = sst [smem:[%s45]] 7.0
    %s47 = scalar_lea.smem [#allocation7], 5
    %48 = sst [smem:[%s47]] 8.0
    %s49 = scalar_lea.smem [#allocation7], 6
    %50 = sst [smem:[%s49]] 9.0
    %s51 = sld [smem:[#allocation6]]
    %s52 = scalar_lea.smem [#allocation7], 7
    %53 = sst [smem:[%s52]] %s51
    %s54 = sld [smem:[#allocation6 + $0x1]]
    %s55 = scalar_lea.smem [#allocation7], 8
    %56 = sst [smem:[%s55]] %s54
    // Predicated region
    $region18: #{tpu_custom_call.1} parent=1 // pred_check
      _
    $region19: #{tpu_custom_call.1} parent=1 // pred_check_branch
      %58 = sbr.rel (0) target = $region21
    $region20: #{tpu_custom_call.1} parent=1 // pred_region
      %s60 = ssub.s32 16, 16
      %61 = vsyncadd [#allocation4], %s60
      %64 = dma.smem_to_hbm [#allocation7], 16, %s2, [#allocation4]
    $region21: #{tpu_custom_call.1} parent=1 // pred_fallthru
      _
    // Predicated region
    $region22: #{tpu_custom_call.1} parent=1 // pred_check
      _
    $region23: #{tpu_custom_call.1} parent=1 // pred_check_branch
      %66 = sbr.rel (0) target = $region25
    $region24: #{tpu_custom_call.1} parent=1 // pred_region
      %67 = dma.done [#allocation4], 16
    $region25: #{tpu_custom_call.1} parent=1 // pred_fallthru
      _
    %68 = sfence
    %69 = vsyncpa [#allocation3], 1
    %70 = vsyncpa [#allocation4], 1
    %71 = vsyncpa [#allocation5], 1

</llo_original>
